<compile_context>
chip_gen: v5e
topology: v5e:2x2
jax: 0.10.0
libtpu: 0.0.40
codegen_flags: <defaults>
</compile_context>

<pallas_src>
import functools

import numpy as np
import jax
import jax.numpy as jnp
from jax import lax
from jax.experimental import pallas as pl
from jax.experimental.pallas import tpu as pltpu


# ----------------------------------------------------------------------------
# Mask construction (identical to MADE.create_masks, sequential ordering)
# ----------------------------------------------------------------------------
def create_masks(input_size, hidden_size, n_hidden):
    input_degrees = np.arange(input_size)
    degrees = [input_degrees]
    for _ in range(n_hidden + 1):
        degrees.append(np.arange(hidden_size) % (input_size - 1))
    degrees.append(np.arange(input_size) % input_size - 1)  # == arange - 1
    masks = []
    for d0, d1 in zip(degrees[:-1], degrees[1:]):
        masks.append((d1[:, None] >= d0[None, :]).astype(np.float32))
    return masks


# ----------------------------------------------------------------------------
# Pallas kernel: full MADE forward (z -> x), D sequential autoregressive passes
# over one (TB, D) batch tile.  Weights arrive pre-masked and pre-transposed
# to (in, out); the output layer is fused (mu | alpha) along the out dim.
# ----------------------------------------------------------------------------
def _made_forward_kernel(n_hidden, D, *refs):
    z_ref = refs[0]
    w0_ref, b0_ref = refs[1], refs[2]
    idx = 3
    if n_hidden > 0:
        wh_ref, bh_ref = refs[idx], refs[idx + 1]
        idx += 2
    wo_ref, bo_ref = refs[idx], refs[idx + 1]
    x_ref, ld_ref = refs[idx + 2], refs[idx + 3]

    z = z_ref[...]                                   # (TB, D) f32

    # Load parameters once (tiny; stay resident across all D passes).
    w0 = w0_ref[...]                                 # (D, H)   (in, out)
    b0 = b0_ref[...]                                 # (1, H)   sublane-broadcast add
    whs = [wh_ref[i] for i in range(n_hidden)] if n_hidden > 0 else []
    bhs = [bh_ref[i] for i in range(n_hidden)] if n_hidden > 0 else []
    wo = wo_ref[...]                                 # (H, 2D)  fused mu|alpha
    bo = bo_ref[...]                                 # (1, 2D)

    def net(x):
        h = jnp.dot(x, w0, preferred_element_type=jnp.float32) + b0
        h = jnp.maximum(h, 0.0)
        for i in range(n_hidden):                    # static unroll (small)
            h = jnp.dot(h, whs[i], preferred_element_type=jnp.float32) + bhs[i]
            h = jnp.maximum(h, 0.0)
        r = jnp.dot(h, wo, preferred_element_type=jnp.float32) + bo  # (TB, 2D)
        return r[:, :D], r[:, D:]                    # mu, alpha

    def body(_, x):
        mu, alpha = net(x)
        return mu + jnp.exp(alpha) * z

    # D-1 passes carrying only x; final pass peeled for the epilogue.
    x = lax.fori_loop(0, D - 1, body, jnp.zeros_like(z), unroll=True)
    mu, alpha = net(x)
    x = mu + jnp.exp(alpha) * z

    x_ref[...] = x
    ld_ref[...] = jnp.sum(alpha, axis=1, keepdims=True)   # in-kernel log_det


# ----------------------------------------------------------------------------
# Wrapper
# ----------------------------------------------------------------------------
def _choose_tile(B, tb_max):
    """Batch tile: multiple of 8, <= tb_max, and (when possible) >= 2 grid steps."""
    b8 = ((B + 7) // 8) * 8
    tb = min(tb_max, b8)
    if b8 > 8:
        half = ((b8 // 2 + 7) // 8) * 8
        tb = min(tb, half)
    tb = max(8, (tb // 8) * 8)
    b_pad = ((B + tb - 1) // tb) * tb
    return tb, b_pad


def made_forward(z, params, masks, input_size, hidden_size, n_hidden, *, tb_max=256):
    B, D = z.shape
    H = hidden_size
    assert D == input_size

    (w0, b0) = params[0]
    hidden_params = params[1:-1]
    (wo, bo) = params[-1]

    def rep(shape):
        nd = len(shape)
        return pl.BlockSpec(shape, lambda i, _nd=nd: (0,) * _nd)

    # Pre-fold masks and pre-transpose to (in, out) -> no in-kernel layout work.
    w0t = (jnp.asarray(masks[0]) * w0).T                           # (D, H)
    b0r = b0[None, :]                                              # (1, H)

    param_inputs = [w0t, b0r]
    param_specs = [rep((D, H)), rep((1, H))]

    if n_hidden > 0:
        wht = jnp.stack([(jnp.asarray(masks[i + 1]) * hidden_params[i][0]).T
                         for i in range(n_hidden)], axis=0)        # (n_h, H, H)
        bhr = jnp.stack([hidden_params[i][1][None, :]
                         for i in range(n_hidden)], axis=0)        # (n_h, 1, H)
        param_inputs += [wht, bhr]
        param_specs += [rep(wht.shape), rep(bhr.shape)]

    # Fused output layer: (H, 2D) with columns [mu | alpha].
    mo2 = jnp.tile(jnp.asarray(masks[-1]), (2, 1))                 # (2D, H)
    wot = (mo2 * wo).T                                             # (H, 2D)
    bor = bo[None, :]                                              # (1, 2D)
    param_inputs += [wot, bor]
    param_specs += [rep((H, 2 * D)), rep((1, 2 * D))]

    # Batch tiling / padding.
    tb, b_pad = _choose_tile(B, tb_max)
    z_p = z if b_pad == B else jnp.zeros((b_pad, D), z.dtype).at[:B].set(z)
    grid = (b_pad // tb,)

    kernel = functools.partial(_made_forward_kernel, n_hidden, D)

    x_p, ld_p = pl.pallas_call(
        kernel,
        grid=grid,
        in_specs=[pl.BlockSpec((tb, D), lambda i: (i, 0))] + param_specs,
        out_specs=(
            pl.BlockSpec((tb, D), lambda i: (i, 0)),   # x
            pl.BlockSpec((tb, 1), lambda i: (i, 0)),   # log_det
        ),
        out_shape=(
            jax.ShapeDtypeStruct((b_pad, D), jnp.float32),
            jax.ShapeDtypeStruct((b_pad, 1), jnp.float32),
        ),
        compiler_params=pltpu.CompilerParams(
            dimension_semantics=("parallel",),
            vmem_limit_bytes=32 * 1024 * 1024,
        ),
    )(z_p, *param_inputs)

    return x_p[:B], ld_p[:B, 0]


# ----------------------------------------------------------------------------
# Deterministic parameter init (matches nn.Linear shapes: W (out,in), b (out,))
# ----------------------------------------------------------------------------
def init_params(key, input_size, hidden_size, n_hidden):
    layer_dims = ([(input_size, hidden_size)]
                  + [(hidden_size, hidden_size)] * n_hidden
                  + [(hidden_size, 2 * input_size)])
    params = []
    for fan_in, fan_out in layer_dims:
        key, k1, k2 = jax.random.split(key, 3)
        bound = 1.0 / np.sqrt(fan_in)
        W = jax.random.uniform(k1, (fan_out, fan_in), jnp.float32, -bound, bound)
        b = jax.random.uniform(k2, (fan_out,), jnp.float32, -bound, bound)
        params.append((W, b))
    return params


# ----------------------------------------------------------------------------
# Pure-JAX reference (for correctness check)
# ----------------------------------------------------------------------------
def made_forward_ref(z, params, masks, input_size, n_hidden):
    def net(x):
        h = x
        for li in range(n_hidden + 1):
            W, b = params[li]
            m = jnp.asarray(masks[li])
            h = h @ (m * W).T + b
            h = jnp.maximum(h, 0.0)
        W, b = params[-1]
        m = jnp.tile(jnp.asarray(masks[-1]), (2, 1))
        return h @ (m * W).T + b

    x = jnp.zeros_like(z)
    alpha = None
    for _ in range(input_size):
        h = net(x)
        mu, alpha = h[:, :input_size], h[:, input_size:]
        x = mu + jnp.exp(alpha) * z
    return x, jnp.sum(alpha, axis=1)


if __name__ == "__main__":
    input_size, hidden_size, n_hidden = 8, 32, 2

    key = jax.random.PRNGKey(0)
    kz1, kz2, kp = jax.random.split(key, 3)

    params = init_params(kp, input_size, hidden_size, n_hidden)
    masks = create_masks(input_size, hidden_size, n_hidden)

    # Small batch (single grid step) and a larger batch (multi-step parallel grid).
    for kz, batch in ((kz1, 4), (kz2, 64)):
        z = jax.random.normal(kz, (batch, input_size), dtype=jnp.float32)

        x, log_det = made_forward(z, params, masks, input_size, hidden_size, n_hidden)
        x = jax.block_until_ready(x)
        log_det = jax.block_until_ready(log_det)

        x_ref, ld_ref = made_forward_ref(z, params, masks, input_size, n_hidden)
        np.testing.assert_allclose(np.asarray(x), np.asarray(x_ref),
                                   rtol=1e-5, atol=1e-5)
        np.testing.assert_allclose(np.asarray(log_det), np.asarray(ld_ref),
                                   rtol=1e-5, atol=1e-5)

        assert x.shape == (batch, input_size)
        assert log_det.shape == (batch,)

    print("KERNEL_OK")
</pallas_src>

<mosaic_0001>
module attributes {stable_mosaic.version = 11 : i64} {
  func.func @_made_forward_kernel(%arg0: i32, %arg1: memref<8x8xf32, #tpu.memory_space<vmem>>, %arg2: memref<8x32xf32, #tpu.memory_space<vmem>>, %arg3: memref<1x32xf32, #tpu.memory_space<vmem>>, %arg4: memref<2x32x32xf32, #tpu.memory_space<vmem>>, %arg5: memref<2x1x32xf32, #tpu.memory_space<vmem>>, %arg6: memref<32x16xf32, #tpu.memory_space<vmem>>, %arg7: memref<1x16xf32, #tpu.memory_space<vmem>>, %arg8: memref<8x8xf32, #tpu.memory_space<vmem>>, %arg9: memref<8x1xf32, #tpu.memory_space<vmem>>) attributes {dimension_semantics = [#tpu.dimension_semantics<parallel>], iteration_bounds = array<i64: 1>, scalar_prefetch = 0 : i64, scratch_operands = 0 : i64, tpu.core_type = #tpu.core_type<tc>, window_params = [{transform_indices = @transform_0, window_bounds = array<i64: 8, 8>}, {pipeline_mode = #tpu.pipeline_mode<synchronous>, transform_indices = @transform_1, window_bounds = array<i64: 8, 32>}, {pipeline_mode = #tpu.pipeline_mode<synchronous>, transform_indices = @transform_2, window_bounds = array<i64: 1, 32>}, {pipeline_mode = #tpu.pipeline_mode<synchronous>, transform_indices = @transform_3, window_bounds = array<i64: 2, 32, 32>}, {pipeline_mode = #tpu.pipeline_mode<synchronous>, transform_indices = @transform_4, window_bounds = array<i64: 2, 1, 32>}, {pipeline_mode = #tpu.pipeline_mode<synchronous>, transform_indices = @transform_5, window_bounds = array<i64: 32, 16>}, {pipeline_mode = #tpu.pipeline_mode<synchronous>, transform_indices = @transform_6, window_bounds = array<i64: 1, 16>}, {transform_indices = @transform_7, window_bounds = array<i64: 8, 8>}, {transform_indices = @transform_8, window_bounds = array<i64: 8, 1>}]} {
    %c0 = arith.constant 0 : index
    %c0_0 = arith.constant 0 : index
    %0 = vector.load %arg1[%c0, %c0_0] : memref<8x8xf32, #tpu.memory_space<vmem>>, vector<8x8xf32>
    %c0_1 = arith.constant 0 : index
    %c0_2 = arith.constant 0 : index
    %1 = vector.load %arg2[%c0_1, %c0_2] : memref<8x32xf32, #tpu.memory_space<vmem>>, vector<8x32xf32>
    %c0_3 = arith.constant 0 : index
    %c0_4 = arith.constant 0 : index
    %2 = vector.load %arg3[%c0_3, %c0_4] : memref<1x32xf32, #tpu.memory_space<vmem>>, vector<1x32xf32>
    %c0_5 = arith.constant 0 : index
    %c0_6 = arith.constant 0 : index
    %c0_7 = arith.constant 0 : index
    %3 = vector.load %arg4[%c0_5, %c0_6, %c0_7] : memref<2x32x32xf32, #tpu.memory_space<vmem>>, vector<1x32x32xf32>
    %4 = vector.shape_cast %3 : vector<1x32x32xf32> to vector<32x32xf32>
    %c1 = arith.constant 1 : index
    %c0_8 = arith.constant 0 : index
    %c0_9 = arith.constant 0 : index
    %5 = vector.load %arg4[%c1, %c0_8, %c0_9] : memref<2x32x32xf32, #tpu.memory_space<vmem>>, vector<1x32x32xf32>
    %6 = vector.shape_cast %5 : vector<1x32x32xf32> to vector<32x32xf32>
    %c0_10 = arith.constant 0 : index
    %c0_11 = arith.constant 0 : index
    %c0_12 = arith.constant 0 : index
    %7 = vector.load %arg5[%c0_10, %c0_11, %c0_12] : memref<2x1x32xf32, #tpu.memory_space<vmem>>, vector<1x1x32xf32>
    %8 = vector.shape_cast %7 : vector<1x1x32xf32> to vector<1x32xf32>
    %c1_13 = arith.constant 1 : index
    %c0_14 = arith.constant 0 : index
    %c0_15 = arith.constant 0 : index
    %9 = vector.load %arg5[%c1_13, %c0_14, %c0_15] : memref<2x1x32xf32, #tpu.memory_space<vmem>>, vector<1x1x32xf32>
    %10 = vector.shape_cast %9 : vector<1x1x32xf32> to vector<1x32xf32>
    %c0_16 = arith.constant 0 : index
    %c0_17 = arith.constant 0 : index
    %11 = vector.load %arg6[%c0_16, %c0_17] : memref<32x16xf32, #tpu.memory_space<vmem>>, vector<32x16xf32>
    %c0_18 = arith.constant 0 : index
    %c0_19 = arith.constant 0 : index
    %12 = vector.load %arg7[%c0_18, %c0_19] : memref<1x16xf32, #tpu.memory_space<vmem>>, vector<1x16xf32>
    %cst = arith.constant 0.000000e+00 : f32
    %13 = vector.broadcast %cst : f32 to vector<8x8xf32>
    %c0_i32 = arith.constant 0 : i32
    %cst_20 = arith.constant dense<0.000000e+00> : vector<8x32xf32>
    %14 = tpu.matmul %13, %1, %cst_20 {dimension_numbers = #tpu.dot_dimension_numbers<[1], [0], [0], [1], [0, 0, 1, 1], [], []>} : vector<8x8xf32>, vector<8x32xf32>, vector<8x32xf32> -> vector<8x32xf32>
    %15 = vector.broadcast %2 : vector<1x32xf32> to vector<8x32xf32>
    %16 = arith.addf %14, %15 : vector<8x32xf32>
    %cst_21 = arith.constant 0.000000e+00 : f32
    %17 = vector.broadcast %cst_21 : f32 to vector<8x32xf32>
    %18 = arith.maximumf %16, %17 : vector<8x32xf32>
    %cst_22 = arith.constant dense<0.000000e+00> : vector<8x32xf32>
    %19 = tpu.matmul %18, %4, %cst_22 {dimension_numbers = #tpu.dot_dimension_numbers<[1], [0], [0], [1], [0, 0, 1, 1], [], []>} : vector<8x32xf32>, vector<32x32xf32>, vector<8x32xf32> -> vector<8x32xf32>
    %20 = vector.broadcast %8 : vector<1x32xf32> to vector<8x32xf32>
    %21 = arith.addf %19, %20 : vector<8x32xf32>
    %cst_23 = arith.constant 0.000000e+00 : f32
    %22 = vector.broadcast %cst_23 : f32 to vector<8x32xf32>
    %23 = arith.maximumf %21, %22 : vector<8x32xf32>
    %cst_24 = arith.constant dense<0.000000e+00> : vector<8x32xf32>
    %24 = tpu.matmul %23, %6, %cst_24 {dimension_numbers = #tpu.dot_dimension_numbers<[1], [0], [0], [1], [0, 0, 1, 1], [], []>} : vector<8x32xf32>, vector<32x32xf32>, vector<8x32xf32> -> vector<8x32xf32>
    %25 = vector.broadcast %10 : vector<1x32xf32> to vector<8x32xf32>
    %26 = arith.addf %24, %25 : vector<8x32xf32>
    %cst_25 = arith.constant 0.000000e+00 : f32
    %27 = vector.broadcast %cst_25 : f32 to vector<8x32xf32>
    %28 = arith.maximumf %26, %27 : vector<8x32xf32>
    %cst_26 = arith.constant dense<0.000000e+00> : vector<8x16xf32>
    %29 = tpu.matmul %28, %11, %cst_26 {dimension_numbers = #tpu.dot_dimension_numbers<[1], [0], [0], [1], [0, 0, 1, 1], [], []>} : vector<8x32xf32>, vector<32x16xf32>, vector<8x16xf32> -> vector<8x16xf32>
    %30 = vector.broadcast %12 : vector<1x16xf32> to vector<8x16xf32>
    %31 = arith.addf %29, %30 : vector<8x16xf32>
    %32 = vector.extract_strided_slice %31 {offsets = [0, 0], sizes = [8, 8], strides = [1, 1]} : vector<8x16xf32> to vector<8x8xf32>
    %33 = vector.extract_strided_slice %31 {offsets = [0, 8], sizes = [8, 8], strides = [1, 1]} : vector<8x16xf32> to vector<8x8xf32>
    %34 = math.exp %33 : vector<8x8xf32>
    %35 = arith.mulf %34, %0 : vector<8x8xf32>
    %36 = arith.addf %32, %35 : vector<8x8xf32>
    %c1_i32 = arith.constant 1 : i32
    %cst_27 = arith.constant dense<0.000000e+00> : vector<8x32xf32>
    %37 = tpu.matmul %36, %1, %cst_27 {dimension_numbers = #tpu.dot_dimension_numbers<[1], [0], [0], [1], [0, 0, 1, 1], [], []>} : vector<8x8xf32>, vector<8x32xf32>, vector<8x32xf32> -> vector<8x32xf32>
    %38 = vector.broadcast %2 : vector<1x32xf32> to vector<8x32xf32>
    %39 = arith.addf %37, %38 : vector<8x32xf32>
    %cst_28 = arith.constant 0.000000e+00 : f32
    %40 = vector.broadcast %cst_28 : f32 to vector<8x32xf32>
    %41 = arith.maximumf %39, %40 : vector<8x32xf32>
    %cst_29 = arith.constant dense<0.000000e+00> : vector<8x32xf32>
    %42 = tpu.matmul %41, %4, %cst_29 {dimension_numbers = #tpu.dot_dimension_numbers<[1], [0], [0], [1], [0, 0, 1, 1], [], []>} : vector<8x32xf32>, vector<32x32xf32>, vector<8x32xf32> -> vector<8x32xf32>
    %43 = vector.broadcast %8 : vector<1x32xf32> to vector<8x32xf32>
    %44 = arith.addf %42, %43 : vector<8x32xf32>
    %cst_30 = arith.constant 0.000000e+00 : f32
    %45 = vector.broadcast %cst_30 : f32 to vector<8x32xf32>
    %46 = arith.maximumf %44, %45 : vector<8x32xf32>
    %cst_31 = arith.constant dense<0.000000e+00> : vector<8x32xf32>
    %47 = tpu.matmul %46, %6, %cst_31 {dimension_numbers = #tpu.dot_dimension_numbers<[1], [0], [0], [1], [0, 0, 1, 1], [], []>} : vector<8x32xf32>, vector<32x32xf32>, vector<8x32xf32> -> vector<8x32xf32>
    %48 = vector.broadcast %10 : vector<1x32xf32> to vector<8x32xf32>
    %49 = arith.addf %47, %48 : vector<8x32xf32>
    %cst_32 = arith.constant 0.000000e+00 : f32
    %50 = vector.broadcast %cst_32 : f32 to vector<8x32xf32>
    %51 = arith.maximumf %49, %50 : vector<8x32xf32>
    %cst_33 = arith.constant dense<0.000000e+00> : vector<8x16xf32>
    %52 = tpu.matmul %51, %11, %cst_33 {dimension_numbers = #tpu.dot_dimension_numbers<[1], [0], [0], [1], [0, 0, 1, 1], [], []>} : vector<8x32xf32>, vector<32x16xf32>, vector<8x16xf32> -> vector<8x16xf32>
    %53 = vector.broadcast %12 : vector<1x16xf32> to vector<8x16xf32>
    %54 = arith.addf %52, %53 : vector<8x16xf32>
    %55 = vector.extract_strided_slice %54 {offsets = [0, 0], sizes = [8, 8], strides = [1, 1]} : vector<8x16xf32> to vector<8x8xf32>
    %56 = vector.extract_strided_slice %54 {offsets = [0, 8], sizes = [8, 8], strides = [1, 1]} : vector<8x16xf32> to vector<8x8xf32>
    %57 = math.exp %56 : vector<8x8xf32>
    %58 = arith.mulf %57, %0 : vector<8x8xf32>
    %59 = arith.addf %55, %58 : vector<8x8xf32>
    %c2_i32 = arith.constant 2 : i32
    %cst_34 = arith.constant dense<0.000000e+00> : vector<8x32xf32>
    %60 = tpu.matmul %59, %1, %cst_34 {dimension_numbers = #tpu.dot_dimension_numbers<[1], [0], [0], [1], [0, 0, 1, 1], [], []>} : vector<8x8xf32>, vector<8x32xf32>, vector<8x32xf32> -> vector<8x32xf32>
    %61 = vector.broadcast %2 : vector<1x32xf32> to vector<8x32xf32>
    %62 = arith.addf %60, %61 : vector<8x32xf32>
    %cst_35 = arith.constant 0.000000e+00 : f32
    %63 = vector.broadcast %cst_35 : f32 to vector<8x32xf32>
    %64 = arith.maximumf %62, %63 : vector<8x32xf32>
    %cst_36 = arith.constant dense<0.000000e+00> : vector<8x32xf32>
    %65 = tpu.matmul %64, %4, %cst_36 {dimension_numbers = #tpu.dot_dimension_numbers<[1], [0], [0], [1], [0, 0, 1, 1], [], []>} : vector<8x32xf32>, vector<32x32xf32>, vector<8x32xf32> -> vector<8x32xf32>
    %66 = vector.broadcast %8 : vector<1x32xf32> to vector<8x32xf32>
    %67 = arith.addf %65, %66 : vector<8x32xf32>
    %cst_37 = arith.constant 0.000000e+00 : f32
    %68 = vector.broadcast %cst_37 : f32 to vector<8x32xf32>
    %69 = arith.maximumf %67, %68 : vector<8x32xf32>
    %cst_38 = arith.constant dense<0.000000e+00> : vector<8x32xf32>
    %70 = tpu.matmul %69, %6, %cst_38 {dimension_numbers = #tpu.dot_dimension_numbers<[1], [0], [0], [1], [0, 0, 1, 1], [], []>} : vector<8x32xf32>, vector<32x32xf32>, vector<8x32xf32> -> vector<8x32xf32>
    %71 = vector.broadcast %10 : vector<1x32xf32> to vector<8x32xf32>
    %72 = arith.addf %70, %71 : vector<8x32xf32>
    %cst_39 = arith.constant 0.000000e+00 : f32
    %73 = vector.broadcast %cst_39 : f32 to vector<8x32xf32>
    %74 = arith.maximumf %72, %73 : vector<8x32xf32>
    %cst_40 = arith.constant dense<0.000000e+00> : vector<8x16xf32>
    %75 = tpu.matmul %74, %11, %cst_40 {dimension_numbers = #tpu.dot_dimension_numbers<[1], [0], [0], [1], [0, 0, 1, 1], [], []>} : vector<8x32xf32>, vector<32x16xf32>, vector<8x16xf32> -> vector<8x16xf32>
    %76 = vector.broadcast %12 : vector<1x16xf32> to vector<8x16xf32>
    %77 = arith.addf %75, %76 : vector<8x16xf32>
    %78 = vector.extract_strided_slice %77 {offsets = [0, 0], sizes = [8, 8], strides = [1, 1]} : vector<8x16xf32> to vector<8x8xf32>
    %79 = vector.extract_strided_slice %77 {offsets = [0, 8], sizes = [8, 8], strides = [1, 1]} : vector<8x16xf32> to vector<8x8xf32>
    %80 = math.exp %79 : vector<8x8xf32>
    %81 = arith.mulf %80, %0 : vector<8x8xf32>
    %82 = arith.addf %78, %81 : vector<8x8xf32>
    %c3_i32 = arith.constant 3 : i32
    %cst_41 = arith.constant dense<0.000000e+00> : vector<8x32xf32>
    %83 = tpu.matmul %82, %1, %cst_41 {dimension_numbers = #tpu.dot_dimension_numbers<[1], [0], [0], [1], [0, 0, 1, 1], [], []>} : vector<8x8xf32>, vector<8x32xf32>, vector<8x32xf32> -> vector<8x32xf32>
    %84 = vector.broadcast %2 : vector<1x32xf32> to vector<8x32xf32>
    %85 = arith.addf %83, %84 : vector<8x32xf32>
    %cst_42 = arith.constant 0.000000e+00 : f32
    %86 = vector.broadcast %cst_42 : f32 to vector<8x32xf32>
    %87 = arith.maximumf %85, %86 : vector<8x32xf32>
    %cst_43 = arith.constant dense<0.000000e+00> : vector<8x32xf32>
    %88 = tpu.matmul %87, %4, %cst_43 {dimension_numbers = #tpu.dot_dimension_numbers<[1], [0], [0], [1], [0, 0, 1, 1], [], []>} : vector<8x32xf32>, vector<32x32xf32>, vector<8x32xf32> -> vector<8x32xf32>
    %89 = vector.broadcast %8 : vector<1x32xf32> to vector<8x32xf32>
    %90 = arith.addf %88, %89 : vector<8x32xf32>
    %cst_44 = arith.constant 0.000000e+00 : f32
    %91 = vector.broadcast %cst_44 : f32 to vector<8x32xf32>
    %92 = arith.maximumf %90, %91 : vector<8x32xf32>
    %cst_45 = arith.constant dense<0.000000e+00> : vector<8x32xf32>
    %93 = tpu.matmul %92, %6, %cst_45 {dimension_numbers = #tpu.dot_dimension_numbers<[1], [0], [0], [1], [0, 0, 1, 1], [], []>} : vector<8x32xf32>, vector<32x32xf32>, vector<8x32xf32> -> vector<8x32xf32>
    %94 = vector.broadcast %10 : vector<1x32xf32> to vector<8x32xf32>
    %95 = arith.addf %93, %94 : vector<8x32xf32>
    %cst_46 = arith.constant 0.000000e+00 : f32
    %96 = vector.broadcast %cst_46 : f32 to vector<8x32xf32>
    %97 = arith.maximumf %95, %96 : vector<8x32xf32>
    %cst_47 = arith.constant dense<0.000000e+00> : vector<8x16xf32>
    %98 = tpu.matmul %97, %11, %cst_47 {dimension_numbers = #tpu.dot_dimension_numbers<[1], [0], [0], [1], [0, 0, 1, 1], [], []>} : vector<8x32xf32>, vector<32x16xf32>, vector<8x16xf32> -> vector<8x16xf32>
    %99 = vector.broadcast %12 : vector<1x16xf32> to vector<8x16xf32>
    %100 = arith.addf %98, %99 : vector<8x16xf32>
    %101 = vector.extract_strided_slice %100 {offsets = [0, 0], sizes = [8, 8], strides = [1, 1]} : vector<8x16xf32> to vector<8x8xf32>
    %102 = vector.extract_strided_slice %100 {offsets = [0, 8], sizes = [8, 8], strides = [1, 1]} : vector<8x16xf32> to vector<8x8xf32>
    %103 = math.exp %102 : vector<8x8xf32>
    %104 = arith.mulf %103, %0 : vector<8x8xf32>
    %105 = arith.addf %101, %104 : vector<8x8xf32>
    %c4_i32 = arith.constant 4 : i32
    %cst_48 = arith.constant dense<0.000000e+00> : vector<8x32xf32>
    %106 = tpu.matmul %105, %1, %cst_48 {dimension_numbers = #tpu.dot_dimension_numbers<[1], [0], [0], [1], [0, 0, 1, 1], [], []>} : vector<8x8xf32>, vector<8x32xf32>, vector<8x32xf32> -> vector<8x32xf32>
    %107 = vector.broadcast %2 : vector<1x32xf32> to vector<8x32xf32>
    %108 = arith.addf %106, %107 : vector<8x32xf32>
    %cst_49 = arith.constant 0.000000e+00 : f32
    %109 = vector.broadcast %cst_49 : f32 to vector<8x32xf32>
    %110 = arith.maximumf %108, %109 : vector<8x32xf32>
    %cst_50 = arith.constant dense<0.000000e+00> : vector<8x32xf32>
    %111 = tpu.matmul %110, %4, %cst_50 {dimension_numbers = #tpu.dot_dimension_numbers<[1], [0], [0], [1], [0, 0, 1, 1], [], []>} : vector<8x32xf32>, vector<32x32xf32>, vector<8x32xf32> -> vector<8x32xf32>
    %112 = vector.broadcast %8 : vector<1x32xf32> to vector<8x32xf32>
    %113 = arith.addf %111, %112 : vector<8x32xf32>
    %cst_51 = arith.constant 0.000000e+00 : f32
    %114 = vector.broadcast %cst_51 : f32 to vector<8x32xf32>
    %115 = arith.maximumf %113, %114 : vector<8x32xf32>
    %cst_52 = arith.constant dense<0.000000e+00> : vector<8x32xf32>
    %116 = tpu.matmul %115, %6, %cst_52 {dimension_numbers = #tpu.dot_dimension_numbers<[1], [0], [0], [1], [0, 0, 1, 1], [], []>} : vector<8x32xf32>, vector<32x32xf32>, vector<8x32xf32> -> vector<8x32xf32>
    %117 = vector.broadcast %10 : vector<1x32xf32> to vector<8x32xf32>
    %118 = arith.addf %116, %117 : vector<8x32xf32>
    %cst_53 = arith.constant 0.000000e+00 : f32
    %119 = vector.broadcast %cst_53 : f32 to vector<8x32xf32>
    %120 = arith.maximumf %118, %119 : vector<8x32xf32>
    %cst_54 = arith.constant dense<0.000000e+00> : vector<8x16xf32>
    %121 = tpu.matmul %120, %11, %cst_54 {dimension_numbers = #tpu.dot_dimension_numbers<[1], [0], [0], [1], [0, 0, 1, 1], [], []>} : vector<8x32xf32>, vector<32x16xf32>, vector<8x16xf32> -> vector<8x16xf32>
    %122 = vector.broadcast %12 : vector<1x16xf32> to vector<8x16xf32>
    %123 = arith.addf %121, %122 : vector<8x16xf32>
    %124 = vector.extract_strided_slice %123 {offsets = [0, 0], sizes = [8, 8], strides = [1, 1]} : vector<8x16xf32> to vector<8x8xf32>
    %125 = vector.extract_strided_slice %123 {offsets = [0, 8], sizes = [8, 8], strides = [1, 1]} : vector<8x16xf32> to vector<8x8xf32>
    %126 = math.exp %125 : vector<8x8xf32>
    %127 = arith.mulf %126, %0 : vector<8x8xf32>
    %128 = arith.addf %124, %127 : vector<8x8xf32>
    %c5_i32 = arith.constant 5 : i32
    %cst_55 = arith.constant dense<0.000000e+00> : vector<8x32xf32>
    %129 = tpu.matmul %128, %1, %cst_55 {dimension_numbers = #tpu.dot_dimension_numbers<[1], [0], [0], [1], [0, 0, 1, 1], [], []>} : vector<8x8xf32>, vector<8x32xf32>, vector<8x32xf32> -> vector<8x32xf32>
    %130 = vector.broadcast %2 : vector<1x32xf32> to vector<8x32xf32>
    %131 = arith.addf %129, %130 : vector<8x32xf32>
    %cst_56 = arith.constant 0.000000e+00 : f32
    %132 = vector.broadcast %cst_56 : f32 to vector<8x32xf32>
    %133 = arith.maximumf %131, %132 : vector<8x32xf32>
    %cst_57 = arith.constant dense<0.000000e+00> : vector<8x32xf32>
    %134 = tpu.matmul %133, %4, %cst_57 {dimension_numbers = #tpu.dot_dimension_numbers<[1], [0], [0], [1], [0, 0, 1, 1], [], []>} : vector<8x32xf32>, vector<32x32xf32>, vector<8x32xf32> -> vector<8x32xf32>
    %135 = vector.broadcast %8 : vector<1x32xf32> to vector<8x32xf32>
    %136 = arith.addf %134, %135 : vector<8x32xf32>
    %cst_58 = arith.constant 0.000000e+00 : f32
    %137 = vector.broadcast %cst_58 : f32 to vector<8x32xf32>
    %138 = arith.maximumf %136, %137 : vector<8x32xf32>
    %cst_59 = arith.constant dense<0.000000e+00> : vector<8x32xf32>
    %139 = tpu.matmul %138, %6, %cst_59 {dimension_numbers = #tpu.dot_dimension_numbers<[1], [0], [0], [1], [0, 0, 1, 1], [], []>} : vector<8x32xf32>, vector<32x32xf32>, vector<8x32xf32> -> vector<8x32xf32>
    %140 = vector.broadcast %10 : vector<1x32xf32> to vector<8x32xf32>
    %141 = arith.addf %139, %140 : vector<8x32xf32>
    %cst_60 = arith.constant 0.000000e+00 : f32
    %142 = vector.broadcast %cst_60 : f32 to vector<8x32xf32>
    %143 = arith.maximumf %141, %142 : vector<8x32xf32>
    %cst_61 = arith.constant dense<0.000000e+00> : vector<8x16xf32>
    %144 = tpu.matmul %143, %11, %cst_61 {dimension_numbers = #tpu.dot_dimension_numbers<[1], [0], [0], [1], [0, 0, 1, 1], [], []>} : vector<8x32xf32>, vector<32x16xf32>, vector<8x16xf32> -> vector<8x16xf32>
    %145 = vector.broadcast %12 : vector<1x16xf32> to vector<8x16xf32>
    %146 = arith.addf %144, %145 : vector<8x16xf32>
    %147 = vector.extract_strided_slice %146 {offsets = [0, 0], sizes = [8, 8], strides = [1, 1]} : vector<8x16xf32> to vector<8x8xf32>
    %148 = vector.extract_strided_slice %146 {offsets = [0, 8], sizes = [8, 8], strides = [1, 1]} : vector<8x16xf32> to vector<8x8xf32>
    %149 = math.exp %148 : vector<8x8xf32>
    %150 = arith.mulf %149, %0 : vector<8x8xf32>
    %151 = arith.addf %147, %150 : vector<8x8xf32>
    %c6_i32 = arith.constant 6 : i32
    %cst_62 = arith.constant dense<0.000000e+00> : vector<8x32xf32>
    %152 = tpu.matmul %151, %1, %cst_62 {dimension_numbers = #tpu.dot_dimension_numbers<[1], [0], [0], [1], [0, 0, 1, 1], [], []>} : vector<8x8xf32>, vector<8x32xf32>, vector<8x32xf32> -> vector<8x32xf32>
    %153 = vector.broadcast %2 : vector<1x32xf32> to vector<8x32xf32>
    %154 = arith.addf %152, %153 : vector<8x32xf32>
    %cst_63 = arith.constant 0.000000e+00 : f32
    %155 = vector.broadcast %cst_63 : f32 to vector<8x32xf32>
    %156 = arith.maximumf %154, %155 : vector<8x32xf32>
    %cst_64 = arith.constant dense<0.000000e+00> : vector<8x32xf32>
    %157 = tpu.matmul %156, %4, %cst_64 {dimension_numbers = #tpu.dot_dimension_numbers<[1], [0], [0], [1], [0, 0, 1, 1], [], []>} : vector<8x32xf32>, vector<32x32xf32>, vector<8x32xf32> -> vector<8x32xf32>
    %158 = vector.broadcast %8 : vector<1x32xf32> to vector<8x32xf32>
    %159 = arith.addf %157, %158 : vector<8x32xf32>
    %cst_65 = arith.constant 0.000000e+00 : f32
    %160 = vector.broadcast %cst_65 : f32 to vector<8x32xf32>
    %161 = arith.maximumf %159, %160 : vector<8x32xf32>
    %cst_66 = arith.constant dense<0.000000e+00> : vector<8x32xf32>
    %162 = tpu.matmul %161, %6, %cst_66 {dimension_numbers = #tpu.dot_dimension_numbers<[1], [0], [0], [1], [0, 0, 1, 1], [], []>} : vector<8x32xf32>, vector<32x32xf32>, vector<8x32xf32> -> vector<8x32xf32>
    %163 = vector.broadcast %10 : vector<1x32xf32> to vector<8x32xf32>
    %164 = arith.addf %162, %163 : vector<8x32xf32>
    %cst_67 = arith.constant 0.000000e+00 : f32
    %165 = vector.broadcast %cst_67 : f32 to vector<8x32xf32>
    %166 = arith.maximumf %164, %165 : vector<8x32xf32>
    %cst_68 = arith.constant dense<0.000000e+00> : vector<8x16xf32>
    %167 = tpu.matmul %166, %11, %cst_68 {dimension_numbers = #tpu.dot_dimension_numbers<[1], [0], [0], [1], [0, 0, 1, 1], [], []>} : vector<8x32xf32>, vector<32x16xf32>, vector<8x16xf32> -> vector<8x16xf32>
    %168 = vector.broadcast %12 : vector<1x16xf32> to vector<8x16xf32>
    %169 = arith.addf %167, %168 : vector<8x16xf32>
    %170 = vector.extract_strided_slice %169 {offsets = [0, 0], sizes = [8, 8], strides = [1, 1]} : vector<8x16xf32> to vector<8x8xf32>
    %171 = vector.extract_strided_slice %169 {offsets = [0, 8], sizes = [8, 8], strides = [1, 1]} : vector<8x16xf32> to vector<8x8xf32>
    %172 = math.exp %171 : vector<8x8xf32>
    %173 = arith.mulf %172, %0 : vector<8x8xf32>
    %174 = arith.addf %170, %173 : vector<8x8xf32>
    %cst_69 = arith.constant dense<0.000000e+00> : vector<8x32xf32>
    %175 = tpu.matmul %174, %1, %cst_69 {dimension_numbers = #tpu.dot_dimension_numbers<[1], [0], [0], [1], [0, 0, 1, 1], [], []>} : vector<8x8xf32>, vector<8x32xf32>, vector<8x32xf32> -> vector<8x32xf32>
    %176 = vector.broadcast %2 : vector<1x32xf32> to vector<8x32xf32>
    %177 = arith.addf %175, %176 : vector<8x32xf32>
    %cst_70 = arith.constant 0.000000e+00 : f32
    %178 = vector.broadcast %cst_70 : f32 to vector<8x32xf32>
    %179 = arith.maximumf %177, %178 : vector<8x32xf32>
    %cst_71 = arith.constant dense<0.000000e+00> : vector<8x32xf32>
    %180 = tpu.matmul %179, %4, %cst_71 {dimension_numbers = #tpu.dot_dimension_numbers<[1], [0], [0], [1], [0, 0, 1, 1], [], []>} : vector<8x32xf32>, vector<32x32xf32>, vector<8x32xf32> -> vector<8x32xf32>
    %181 = vector.broadcast %8 : vector<1x32xf32> to vector<8x32xf32>
    %182 = arith.addf %180, %181 : vector<8x32xf32>
    %cst_72 = arith.constant 0.000000e+00 : f32
    %183 = vector.broadcast %cst_72 : f32 to vector<8x32xf32>
    %184 = arith.maximumf %182, %183 : vector<8x32xf32>
    %cst_73 = arith.constant dense<0.000000e+00> : vector<8x32xf32>
    %185 = tpu.matmul %184, %6, %cst_73 {dimension_numbers = #tpu.dot_dimension_numbers<[1], [0], [0], [1], [0, 0, 1, 1], [], []>} : vector<8x32xf32>, vector<32x32xf32>, vector<8x32xf32> -> vector<8x32xf32>
    %186 = vector.broadcast %10 : vector<1x32xf32> to vector<8x32xf32>
    %187 = arith.addf %185, %186 : vector<8x32xf32>
    %cst_74 = arith.constant 0.000000e+00 : f32
    %188 = vector.broadcast %cst_74 : f32 to vector<8x32xf32>
    %189 = arith.maximumf %187, %188 : vector<8x32xf32>
    %cst_75 = arith.constant dense<0.000000e+00> : vector<8x16xf32>
    %190 = tpu.matmul %189, %11, %cst_75 {dimension_numbers = #tpu.dot_dimension_numbers<[1], [0], [0], [1], [0, 0, 1, 1], [], []>} : vector<8x32xf32>, vector<32x16xf32>, vector<8x16xf32> -> vector<8x16xf32>
    %191 = vector.broadcast %12 : vector<1x16xf32> to vector<8x16xf32>
    %192 = arith.addf %190, %191 : vector<8x16xf32>
    %193 = vector.extract_strided_slice %192 {offsets = [0, 0], sizes = [8, 8], strides = [1, 1]} : vector<8x16xf32> to vector<8x8xf32>
    %194 = vector.extract_strided_slice %192 {offsets = [0, 8], sizes = [8, 8], strides = [1, 1]} : vector<8x16xf32> to vector<8x8xf32>
    %195 = math.exp %194 : vector<8x8xf32>
    %196 = arith.mulf %195, %0 : vector<8x8xf32>
    %197 = arith.addf %193, %196 : vector<8x8xf32>
    %c0_76 = arith.constant 0 : index
    %c0_77 = arith.constant 0 : index
    %198 = vector.load %arg8[%c0_76, %c0_77] : memref<8x8xf32, #tpu.memory_space<vmem>>, vector<8x8xf32>
    tpu.vector_store %arg8[%c0_76, %c0_77], %197 {strides = array<i32>} : memref<8x8xf32, #tpu.memory_space<vmem>>, vector<8x8xf32>,
    %cst_78 = arith.constant dense<0.000000e+00> : vector<8xf32>
    %199 = vector.multi_reduction <add>, %194, %cst_78 [1] : vector<8x8xf32> to vector<8xf32>
    %200 = vector.shape_cast %199 : vector<8xf32> to vector<8x1xf32>
    %c0_79 = arith.constant 0 : index
    %c0_80 = arith.constant 0 : index
    %201 = vector.load %arg9[%c0_79, %c0_80] : memref<8x1xf32, #tpu.memory_space<vmem>>, vector<8x1xf32>
    tpu.vector_store %arg9[%c0_79, %c0_80], %200 {strides = array<i32>} : memref<8x1xf32, #tpu.memory_space<vmem>>, vector<8x1xf32>,
    return
  }
  func.func @transform_0(%arg0: i32) -> (i32, i32) {
    %c0_i32 = arith.constant 0 : i32
    %c0_i32_0 = arith.constant 0 : i32
    return %arg0, %c0_i32 : i32, i32
  }
  func.func @transform_1(%arg0: i32) -> (i32, i32) {
    %c0_i32 = arith.constant 0 : i32
    %c0_i32_0 = arith.constant 0 : i32
    %c0_i32_1 = arith.constant 0 : i32
    return %c0_i32, %c0_i32_0 : i32, i32
  }
  func.func @transform_2(%arg0: i32) -> (i32, i32) {
    %c0_i32 = arith.constant 0 : i32
    %c0_i32_0 = arith.constant 0 : i32
    %c0_i32_1 = arith.constant 0 : i32
    return %c0_i32, %c0_i32_0 : i32, i32
  }
  func.func @transform_3(%arg0: i32) -> (i32, i32, i32) {
    %c0_i32 = arith.constant 0 : i32
    %c0_i32_0 = arith.constant 0 : i32
    %c0_i32_1 = arith.constant 0 : i32
    %c0_i32_2 = arith.constant 0 : i32
    return %c0_i32, %c0_i32_0, %c0_i32_1 : i32, i32, i32
  }
  func.func @transform_4(%arg0: i32) -> (i32, i32, i32) {
    %c0_i32 = arith.constant 0 : i32
    %c0_i32_0 = arith.constant 0 : i32
    %c0_i32_1 = arith.constant 0 : i32
    %c0_i32_2 = arith.constant 0 : i32
    return %c0_i32, %c0_i32_0, %c0_i32_1 : i32, i32, i32
  }
  func.func @transform_5(%arg0: i32) -> (i32, i32) {
    %c0_i32 = arith.constant 0 : i32
    %c0_i32_0 = arith.constant 0 : i32
    %c0_i32_1 = arith.constant 0 : i32
    return %c0_i32, %c0_i32_0 : i32, i32
  }
  func.func @transform_6(%arg0: i32) -> (i32, i32) {
    %c0_i32 = arith.constant 0 : i32
    %c0_i32_0 = arith.constant 0 : i32
    %c0_i32_1 = arith.constant 0 : i32
    return %c0_i32, %c0_i32_0 : i32, i32
  }
  func.func @transform_7(%arg0: i32) -> (i32, i32) {
    %c0_i32 = arith.constant 0 : i32
    %c0_i32_0 = arith.constant 0 : i32
    return %arg0, %c0_i32 : i32, i32
  }
  func.func @transform_8(%arg0: i32) -> (i32, i32) {
    %c0_i32 = arith.constant 0 : i32
    %c0_i32_0 = arith.constant 0 : i32
    return %arg0, %c0_i32 : i32, i32
  }
}

</mosaic_0001>

<llo_original>
// kernel: tpu_custom_call.1
$region0: #{tpu_custom_call.1}
  #allocation0 [shape = 'u32[]', space=smem, size = 0x4, offset = 0x4, fixed_abs, tag = 'smem constant byte address 0x4 - core index']
  #allocation1 [shape = 'u32[72,128]{1,0:T(1,128)}', space=vmem, size = 0x9000, scoped, tag = 'internal scratch']
  %s0 = inlined_call_operand.vmem [shape: f32[8,8], index: 0, kind: input, shape index: {}]
  %s1 = inlined_call_operand.vmem [shape: f32[8,32], index: 1, kind: input, shape index: {}]
  %s2 = inlined_call_operand.vmem [shape: f32[1,32], index: 2, kind: input, shape index: {}]
  %s3 = inlined_call_operand.hbm [shape: f32[2,32,32], index: 3, kind: input, shape index: {}]
  %s4 = inlined_call_operand.vmem [shape: f32[2,1,32], index: 4, kind: input, shape index: {}]
  %s5 = inlined_call_operand.vmem [shape: f32[32,16], index: 5, kind: input, shape index: {}]
  %s6 = inlined_call_operand.vmem [shape: f32[1,16], index: 6, kind: input, shape index: {}]
  %s7 = inlined_call_operand.hbm [shape: f32[8,8], index: 7, kind: output, shape index: {0}]
  %s8 = inlined_call_operand.vmem [shape: f32[8,1], index: 8, kind: output, shape index: {1}]
  %9 = xla_tuple %s7, %s8
  %s10 = sld [smem:[#allocation0]]
  $region50: #{tpu_custom_call.1} parent=0
    _
  %s12 = ssub.s32 1, %s10
  %s13 = scalar_select 0, %s12, %s10
  $region1: #{tpu_custom_call.1} parent=0
    #allocation2 [shape = 'u8[32768]{0}', space=vmem, size = 0x8000, scoped, tag = 'input window, operand 3, single buffered']
    #allocation3 [shape = 's32[1]{0}', space=sflag, size = 0x4, scoped, tag = 'scoped memory for tpu_custom_call.1']
    #allocation4 [shape = 's32[1]{0}', space=sflag, size = 0x4, scoped, tag = 'scoped memory for tpu_custom_call.1']
    #allocation5 [shape = 'u8[4096]{0}', space=vmem, size = 0x1000, scoped, tag = 'output window, operand 0, single buffered']
    %14 = vsyncpa [#allocation3], 0
    %15 = vsyncpa [#allocation4], 0
    // Predicated region
    $region2: #{tpu_custom_call.1} parent=1 // pred_check
      _
    $region3: #{tpu_custom_call.1} parent=1 // pred_check_branch
      %17 = sbr.rel (0) target = $region5
    $region4: #{tpu_custom_call.1} parent=1 // pred_region
      _
    $region5: #{tpu_custom_call.1} parent=1 // pred_fallthru
      _
    // Predicated region
    $region6: #{tpu_custom_call.1} parent=1 // pred_check
      _
    $region7: #{tpu_custom_call.1} parent=1 // pred_check_branch
      %19 = sbr.rel (0) target = $region9
    $region8: #{tpu_custom_call.1} parent=1 // pred_region
      _
    $region9: #{tpu_custom_call.1} parent=1 // pred_fallthru
      _
    // Predicated region
    $region10: #{tpu_custom_call.1} parent=1 // pred_check
      _
    $region11: #{tpu_custom_call.1} parent=1 // pred_check_branch
      %21 = sbr.rel (0) target = $region13
    $region12: #{tpu_custom_call.1} parent=1 // pred_region
      _
    $region13: #{tpu_custom_call.1} parent=1 // pred_fallthru
      _
    // Predicated region
    $region14: #{tpu_custom_call.1} parent=1 // pred_check
      _
    $region15: #{tpu_custom_call.1} parent=1 // pred_check_branch
      %23 = sbr.rel (0) target = $region17
    $region16: #{tpu_custom_call.1} parent=1 // pred_region
      %25 = vsyncadd [#allocation3], 0
      %s26 = sshll.u32 %s3, 4
      %s27 = int_to_ptr.hbm [resolvable:$true] %s26
      %s28 = sshll.u32 [#allocation2], 4
      %s29 = int_to_ptr.vmem [resolvable:$true] %s28
      %34 = dma.hbm_to_vmem [thread:$0]  %s27, 1024, %s29, [#allocation3], 128, 128, 8
    $region17: #{tpu_custom_call.1} parent=1 // pred_fallthru
      _
    // Predicated region
    $region18: #{tpu_custom_call.1} parent=1 // pred_check
      _
    $region19: #{tpu_custom_call.1} parent=1 // pred_check_branch
      %36 = sbr.rel (0) target = $region21
    $region20: #{tpu_custom_call.1} parent=1 // pred_region
      _
    $region21: #{tpu_custom_call.1} parent=1 // pred_fallthru
      _
    // Predicated region
    $region22: #{tpu_custom_call.1} parent=1 // pred_check
      _
    $region23: #{tpu_custom_call.1} parent=1 // pred_check_branch
      %38 = sbr.rel (0) target = $region25
    $region24: #{tpu_custom_call.1} parent=1 // pred_region
      _
    $region25: #{tpu_custom_call.1} parent=1 // pred_fallthru
      _
    // Predicated region
    $region26: #{tpu_custom_call.1} parent=1 // pred_check
      _
    $region27: #{tpu_custom_call.1} parent=1 // pred_check_branch
      %40 = sbr.rel (0) target = $region29
    $region28: #{tpu_custom_call.1} parent=1 // pred_region
      _
    $region29: #{tpu_custom_call.1} parent=1 // pred_fallthru
      _
    // Predicated region
    $region30: #{tpu_custom_call.1} parent=1 // pred_check
      _
    $region31: #{tpu_custom_call.1} parent=1 // pred_check_branch
      %42 = sbr.rel (0) target = $region33
    $region32: #{tpu_custom_call.1} parent=1 // pred_region
      %44 = dma.done [#allocation3], 1024
    $region33: #{tpu_custom_call.1} parent=1 // pred_fallthru
      _
    %v45 = vld [vmem:[%s0] sm:$0xff]
    %v46 = vld [vmem:[%s1] sm:$0xff]
    %v47 = vld [vmem:[%s2] sm:$0x1]
    %v48 = vld [vmem:[#allocation2] sm:$0xff]
    %v49 = vld [vmem:[#allocation2 + $0x8] sm:$0xff]
    %v50 = vld [vmem:[#allocation2 + $0x10] sm:$0xff]
    %v51 = vld [vmem:[#allocation2 + $0x18] sm:$0xff]
    %s52 = scalar_lea.vmem [#allocation2], 32
    %v53 = vld [vmem:[%s52] sm:$0xff]
    %v54 = vld [vmem:[%s52 + $0x8] sm:$0xff]
    %v55 = vld [vmem:[%s52 + $0x10] sm:$0xff]
    %v56 = vld [vmem:[%s52 + $0x18] sm:$0xff]
    %v57 = vld [vmem:[%s4] sm:$0x1]
    %s58 = scalar_lea.vmem %s4, 1
    %v59 = vld [vmem:[%s58] sm:$0x1]
    %v60 = vld [vmem:[%s5] sm:$0xff]
    %v61 = vld [vmem:[%s5 + $0x8] sm:$0xff]
    %v62 = vld [vmem:[%s5 + $0x10] sm:$0xff]
    %v63 = vld [vmem:[%s5 + $0x18] sm:$0xff]
    %v64 = vld [vmem:[%s6] sm:$0x1]
    %v66 = vperm.slane %v47, 0
    %vm68 = vcmask 64512
    %v70 = vsel %vm68, 0.0, 0
    %72 = vmatpush.msra.mxu0 0.0
    %73 = vmatpush.msra.mxu0 0.0
    %74 = vmatpush.msra.mxu0 0.0
    %75 = vmatpush.msra.mxu0 0.0
    %76 = vmatpush.msra.mxu0 0.0
    %77 = vmatpush.msra.mxu0 0.0
    %78 = vmatpush.msra.mxu0 0.0
    %79 = vmatpush.msra.mxu0 0.0
    %80 = vmatpush.msra.mxu0 0.0
    %81 = vmatpush.msra.mxu0 0.0
    %82 = vmatpush.msra.mxu0 0.0
    %83 = vmatpush.msra.mxu0 0.0
    %84 = vmatpush.msra.mxu0 0.0
    %85 = vmatpush.msra.mxu0 0.0
    %86 = vmatpush.msra.mxu0 0.0
    %87 = vmatpush.msra.mxu0 %v46
    %88 = vmatmul.f32.gmra.mxu0 %v70
    %v89 = vpop.f32.mrf.mxu0
    %v90 = vadd.f32 %v66, %v89
    %91 = vdwg.mxu0
    %v92 = vmax.f32 %v90, 0.0
    %v94 = vperm.slane %v57, 0
    %vm96 = vcmask 261120
    %v98 = vsel %vm96, %v92, 0
    %100 = vmatpush.msra.mxu0 0.0
    %101 = vmatpush.msra.mxu0 0.0
    %102 = vmatpush.msra.mxu0 0.0
    %103 = vmatpush.msra.mxu0 0.0
    %104 = vmatpush.msra.mxu0 0.0
    %105 = vmatpush.msra.mxu0 0.0
    %106 = vmatpush.msra.mxu0 0.0
    %107 = vmatpush.msra.mxu0 0.0
    %108 = vmatpush.msra.mxu0 0.0
    %109 = vmatpush.msra.mxu0 0.0
    %110 = vmatpush.msra.mxu0 0.0
    %111 = vmatpush.msra.mxu0 0.0
    %112 = vmatpush.msra.mxu0 %v51
    %113 = vmatpush.msra.mxu0 %v50
    %114 = vmatpush.msra.mxu0 %v49
    %115 = vmatpush.msra.mxu0 %v48
    %116 = vmatmul.f32.gmra.mxu0 %v98
    %v117 = vpop.f32.mrf.mxu0
    %v118 = vadd.f32 %v94, %v117
    %119 = vdwg.mxu0
    %v120 = vmax.f32 %v118, 0.0
    %v122 = vperm.slane %v59, 0
    %v125 = vsel %vm96, %v120, 0
    %127 = vmatpush.msra.mxu0 0.0
    %128 = vmatpush.msra.mxu0 0.0
    %129 = vmatpush.msra.mxu0 0.0
    %130 = vmatpush.msra.mxu0 0.0
    %131 = vmatpush.msra.mxu0 0.0
    %132 = vmatpush.msra.mxu0 0.0
    %133 = vmatpush.msra.mxu0 0.0
    %134 = vmatpush.msra.mxu0 0.0
    %135 = vmatpush.msra.mxu0 0.0
    %136 = vmatpush.msra.mxu0 0.0
    %137 = vmatpush.msra.mxu0 0.0
    %138 = vmatpush.msra.mxu0 0.0
    %139 = vmatpush.msra.mxu0 %v56
    %140 = vmatpush.msra.mxu0 %v55
    %141 = vmatpush.msra.mxu0 %v54
    %142 = vmatpush.msra.mxu0 %v53
    %143 = vmatmul.f32.gmra.mxu0 %v125
    %v144 = vpop.f32.mrf.mxu0
    %v145 = vadd.f32 %v122, %v144
    %146 = vdwg.mxu0
    %v147 = vmax.f32 %v145, 0.0
    %v149 = vperm.slane %v64, 0
    %v152 = vsel %vm96, %v147, 0
    %154 = vmatpush.msra.mxu0 0.0
    %155 = vmatpush.msra.mxu0 0.0
    %156 = vmatpush.msra.mxu0 0.0
    %157 = vmatpush.msra.mxu0 0.0
    %158 = vmatpush.msra.mxu0 0.0
    %159 = vmatpush.msra.mxu0 0.0
    %160 = vmatpush.msra.mxu0 0.0
    %161 = vmatpush.msra.mxu0 0.0
    %162 = vmatpush.msra.mxu0 0.0
    %163 = vmatpush.msra.mxu0 0.0
    %164 = vmatpush.msra.mxu0 0.0
    %165 = vmatpush.msra.mxu0 0.0
    %166 = vmatpush.msra.mxu0 %v63
    %167 = vmatpush.msra.mxu0 %v62
    %168 = vmatpush.msra.mxu0 %v61
    %169 = vmatpush.msra.mxu0 %v60
    %170 = vmatmul.f32.gmra.mxu0 %v152
    %v171 = vpop.f32.mrf.mxu0
    %v172 = vadd.f32 %v149, %v171
    %173 = vdwg.mxu0
    %v174 = vmul.f32 %v172, 1.442695
    %v175 = vpow.pop %v174
    %177 = vrot.lane.b32.xlu0 %v45, 8
    %v178 = vpop.permute.xlu0 %177
    %v180 = vmul.f32 %v175, %v178
    %182 = vrot.lane.b32.xlu0 %v180, 120
    %v183 = vpop.permute.xlu0 %182
    %v185 = vadd.f32 %v172, %v183
    %v187 = vsel %vm68, %v185, 0
    %189 = vmatpush.msra.mxu0 0.0
    %190 = vmatpush.msra.mxu0 0.0
    %191 = vmatpush.msra.mxu0 0.0
    %192 = vmatpush.msra.mxu0 0.0
    %193 = vmatpush.msra.mxu0 0.0
    %194 = vmatpush.msra.mxu0 0.0
    %195 = vmatpush.msra.mxu0 0.0
    %196 = vmatpush.msra.mxu0 0.0
    %197 = vmatpush.msra.mxu0 0.0
    %198 = vmatpush.msra.mxu0 0.0
    %199 = vmatpush.msra.mxu0 0.0
    %200 = vmatpush.msra.mxu0 0.0
    %201 = vmatpush.msra.mxu0 0.0
    %202 = vmatpush.msra.mxu0 0.0
    %203 = vmatpush.msra.mxu0 0.0
    %204 = vmatpush.msra.mxu0 %v46
    %205 = vmatmul.f32.gmra.mxu0 %v187
    %v206 = vpop.f32.mrf.mxu0
    %v207 = vadd.f32 %v66, %v206
    %208 = vdwg.mxu0
    %v209 = vmax.f32 %v207, 0.0
    %v211 = vsel %vm96, %v209, 0
    %213 = vmatpush.msra.mxu0 0.0
    %214 = vmatpush.msra.mxu0 0.0
    %215 = vmatpush.msra.mxu0 0.0
    %216 = vmatpush.msra.mxu0 0.0
    %217 = vmatpush.msra.mxu0 0.0
    %218 = vmatpush.msra.mxu0 0.0
    %219 = vmatpush.msra.mxu0 0.0
    %220 = vmatpush.msra.mxu0 0.0
    %221 = vmatpush.msra.mxu0 0.0
    %222 = vmatpush.msra.mxu0 0.0
    %223 = vmatpush.msra.mxu0 0.0
    %224 = vmatpush.msra.mxu0 0.0
    %225 = vmatpush.msra.mxu0 %v51
    %226 = vmatpush.msra.mxu0 %v50
    %227 = vmatpush.msra.mxu0 %v49
    %228 = vmatpush.msra.mxu0 %v48
    %229 = vmatmul.f32.gmra.mxu0 %v211
    %v230 = vpop.f32.mrf.mxu0
    %v231 = vadd.f32 %v94, %v230
    %232 = vdwg.mxu0
    %v233 = vmax.f32 %v231, 0.0
    %v235 = vsel %vm96, %v233, 0
    %237 = vmatpush.msra.mxu0 0.0
    %238 = vmatpush.msra.mxu0 0.0
    %239 = vmatpush.msra.mxu0 0.0
    %240 = vmatpush.msra.mxu0 0.0
    %241 = vmatpush.msra.mxu0 0.0
    %242 = vmatpush.msra.mxu0 0.0
    %243 = vmatpush.msra.mxu0 0.0
    %244 = vmatpush.msra.mxu0 0.0
    %245 = vmatpush.msra.mxu0 0.0
    %246 = vmatpush.msra.mxu0 0.0
    %247 = vmatpush.msra.mxu0 0.0
    %248 = vmatpush.msra.mxu0 0.0
    %249 = vmatpush.msra.mxu0 %v56
    %250 = vmatpush.msra.mxu0 %v55
    %251 = vmatpush.msra.mxu0 %v54
    %252 = vmatpush.msra.mxu0 %v53
    %253 = vmatmul.f32.gmra.mxu0 %v235
    %v254 = vpop.f32.mrf.mxu0
    %v255 = vadd.f32 %v122, %v254
    %256 = vdwg.mxu0
    %v257 = vmax.f32 %v255, 0.0
    %v259 = vsel %vm96, %v257, 0
    %261 = vmatpush.msra.mxu0 0.0
    %262 = vmatpush.msra.mxu0 0.0
    %263 = vmatpush.msra.mxu0 0.0
    %264 = vmatpush.msra.mxu0 0.0
    %265 = vmatpush.msra.mxu0 0.0
    %266 = vmatpush.msra.mxu0 0.0
    %267 = vmatpush.msra.mxu0 0.0
    %268 = vmatpush.msra.mxu0 0.0
    %269 = vmatpush.msra.mxu0 0.0
    %270 = vmatpush.msra.mxu0 0.0
    %271 = vmatpush.msra.mxu0 0.0
    %272 = vmatpush.msra.mxu0 0.0
    %273 = vmatpush.msra.mxu0 %v63
    %274 = vmatpush.msra.mxu0 %v62
    %275 = vmatpush.msra.mxu0 %v61
    %276 = vmatpush.msra.mxu0 %v60
    %277 = vmatmul.f32.gmra.mxu0 %v259
    %v278 = vpop.f32.mrf.mxu0
    %v279 = vadd.f32 %v149, %v278
    %280 = vdwg.mxu0
    %v281 = vmul.f32 %v279, 1.442695
    %v282 = vpow.pop %v281
    %v283 = vmul.f32 %v282, %v178
    %285 = vrot.lane.b32.xlu0 %v283, 120
    %v286 = vpop.permute.xlu0 %285
    %v288 = vadd.f32 %v279, %v286
    %v290 = vsel %vm68, %v288, 0
    %292 = vmatpush.msra.mxu0 0.0
    %293 = vmatpush.msra.mxu0 0.0
    %294 = vmatpush.msra.mxu0 0.0
    %295 = vmatpush.msra.mxu0 0.0
    %296 = vmatpush.msra.mxu0 0.0
    %297 = vmatpush.msra.mxu0 0.0
    %298 = vmatpush.msra.mxu0 0.0
    %299 = vmatpush.msra.mxu0 0.0
    %300 = vmatpush.msra.mxu0 0.0
    %301 = vmatpush.msra.mxu0 0.0
    %302 = vmatpush.msra.mxu0 0.0
    %303 = vmatpush.msra.mxu0 0.0
    %304 = vmatpush.msra.mxu0 0.0
    %305 = vmatpush.msra.mxu0 0.0
    %306 = vmatpush.msra.mxu0 0.0
    %307 = vmatpush.msra.mxu0 %v46
    %308 = vmatmul.f32.gmra.mxu0 %v290
    %v309 = vpop.f32.mrf.mxu0
    %v310 = vadd.f32 %v66, %v309
    %311 = vdwg.mxu0
    %v312 = vmax.f32 %v310, 0.0
    %v314 = vsel %vm96, %v312, 0
    %316 = vmatpush.msra.mxu0 0.0
    %317 = vmatpush.msra.mxu0 0.0
    %318 = vmatpush.msra.mxu0 0.0
    %319 = vmatpush.msra.mxu0 0.0
    %320 = vmatpush.msra.mxu0 0.0
    %321 = vmatpush.msra.mxu0 0.0
    %322 = vmatpush.msra.mxu0 0.0
    %323 = vmatpush.msra.mxu0 0.0
    %324 = vmatpush.msra.mxu0 0.0
    %325 = vmatpush.msra.mxu0 0.0
    %326 = vmatpush.msra.mxu0 0.0
    %327 = vmatpush.msra.mxu0 0.0
    %328 = vmatpush.msra.mxu0 %v51
    %329 = vmatpush.msra.mxu0 %v50
    %330 = vmatpush.msra.mxu0 %v49
    %331 = vmatpush.msra.mxu0 %v48
    %332 = vmatmul.f32.gmra.mxu0 %v314
    %v333 = vpop.f32.mrf.mxu0
    %v334 = vadd.f32 %v94, %v333
    %335 = vdwg.mxu0
    %v336 = vmax.f32 %v334, 0.0
    %v338 = vsel %vm96, %v336, 0
    %340 = vmatpush.msra.mxu0 0.0
    %341 = vmatpush.msra.mxu0 0.0
    %342 = vmatpush.msra.mxu0 0.0
    %343 = vmatpush.msra.mxu0 0.0
    %344 = vmatpush.msra.mxu0 0.0
    %345 = vmatpush.msra.mxu0 0.0
    %346 = vmatpush.msra.mxu0 0.0
    %347 = vmatpush.msra.mxu0 0.0
    %348 = vmatpush.msra.mxu0 0.0
    %349 = vmatpush.msra.mxu0 0.0
    %350 = vmatpush.msra.mxu0 0.0
    %351 = vmatpush.msra.mxu0 0.0
    %352 = vmatpush.msra.mxu0 %v56
    %353 = vmatpush.msra.mxu0 %v55
    %354 = vmatpush.msra.mxu0 %v54
    %355 = vmatpush.msra.mxu0 %v53
    %356 = vmatmul.f32.gmra.mxu0 %v338
    %v357 = vpop.f32.mrf.mxu0
    %v358 = vadd.f32 %v122, %v357
    %359 = vdwg.mxu0
    %v360 = vmax.f32 %v358, 0.0
    %v362 = vsel %vm96, %v360, 0
    %364 = vmatpush.msra.mxu0 0.0
    %365 = vmatpush.msra.mxu0 0.0
    %366 = vmatpush.msra.mxu0 0.0
    %367 = vmatpush.msra.mxu0 0.0
    %368 = vmatpush.msra.mxu0 0.0
    %369 = vmatpush.msra.mxu0 0.0
    %370 = vmatpush.msra.mxu0 0.0
    %371 = vmatpush.msra.mxu0 0.0
    %372 = vmatpush.msra.mxu0 0.0
    %373 = vmatpush.msra.mxu0 0.0
    %374 = vmatpush.msra.mxu0 0.0
    %375 = vmatpush.msra.mxu0 0.0
    %376 = vmatpush.msra.mxu0 %v63
    %377 = vmatpush.msra.mxu0 %v62
    %378 = vmatpush.msra.mxu0 %v61
    %379 = vmatpush.msra.mxu0 %v60
    %380 = vmatmul.f32.gmra.mxu0 %v362
    %v381 = vpop.f32.mrf.mxu0
    %v382 = vadd.f32 %v149, %v381
    %383 = vdwg.mxu0
    %v384 = vmul.f32 %v382, 1.442695
    %v385 = vpow.pop %v384
    %v386 = vmul.f32 %v385, %v178
    %388 = vrot.lane.b32.xlu0 %v386, 120
    %v389 = vpop.permute.xlu0 %388
    %v391 = vadd.f32 %v382, %v389
    %v393 = vsel %vm68, %v391, 0
    %395 = vmatpush.msra.mxu0 0.0
    %396 = vmatpush.msra.mxu0 0.0
    %397 = vmatpush.msra.mxu0 0.0
    %398 = vmatpush.msra.mxu0 0.0
    %399 = vmatpush.msra.mxu0 0.0
    %400 = vmatpush.msra.mxu0 0.0
    %401 = vmatpush.msra.mxu0 0.0
    %402 = vmatpush.msra.mxu0 0.0
    %403 = vmatpush.msra.mxu0 0.0
    %404 = vmatpush.msra.mxu0 0.0
    %405 = vmatpush.msra.mxu0 0.0
    %406 = vmatpush.msra.mxu0 0.0
    %407 = vmatpush.msra.mxu0 0.0
    %408 = vmatpush.msra.mxu0 0.0
    %409 = vmatpush.msra.mxu0 0.0
    %410 = vmatpush.msra.mxu0 %v46
    %411 = vmatmul.f32.gmra.mxu0 %v393
    %v412 = vpop.f32.mrf.mxu0
    %v413 = vadd.f32 %v66, %v412
    %414 = vdwg.mxu0
    %v415 = vmax.f32 %v413, 0.0
    %v417 = vsel %vm96, %v415, 0
    %419 = vmatpush.msra.mxu0 0.0
    %420 = vmatpush.msra.mxu0 0.0
    %421 = vmatpush.msra.mxu0 0.0
    %422 = vmatpush.msra.mxu0 0.0
    %423 = vmatpush.msra.mxu0 0.0
    %424 = vmatpush.msra.mxu0 0.0
    %425 = vmatpush.msra.mxu0 0.0
    %426 = vmatpush.msra.mxu0 0.0
    %427 = vmatpush.msra.mxu0 0.0
    %428 = vmatpush.msra.mxu0 0.0
    %429 = vmatpush.msra.mxu0 0.0
    %430 = vmatpush.msra.mxu0 0.0
    %431 = vmatpush.msra.mxu0 %v51
    %432 = vmatpush.msra.mxu0 %v50
    %433 = vmatpush.msra.mxu0 %v49
    %434 = vmatpush.msra.mxu0 %v48
    %435 = vmatmul.f32.gmra.mxu0 %v417
    %v436 = vpop.f32.mrf.mxu0
    %v437 = vadd.f32 %v94, %v436
    %438 = vdwg.mxu0
    %v439 = vmax.f32 %v437, 0.0
    %v441 = vsel %vm96, %v439, 0
    %443 = vmatpush.msra.mxu0 0.0
    %444 = vmatpush.msra.mxu0 0.0
    %445 = vmatpush.msra.mxu0 0.0
    %446 = vmatpush.msra.mxu0 0.0
    %447 = vmatpush.msra.mxu0 0.0
    %448 = vmatpush.msra.mxu0 0.0
    %449 = vmatpush.msra.mxu0 0.0
    %450 = vmatpush.msra.mxu0 0.0
    %451 = vmatpush.msra.mxu0 0.0
    %452 = vmatpush.msra.mxu0 0.0
    %453 = vmatpush.msra.mxu0 0.0
    %454 = vmatpush.msra.mxu0 0.0
    %455 = vmatpush.msra.mxu0 %v56
    %456 = vmatpush.msra.mxu0 %v55
    %457 = vmatpush.msra.mxu0 %v54
    %458 = vmatpush.msra.mxu0 %v53
    %459 = vmatmul.f32.gmra.mxu0 %v441
    %v460 = vpop.f32.mrf.mxu0
    %v461 = vadd.f32 %v122, %v460
    %462 = vdwg.mxu0
    %v463 = vmax.f32 %v461, 0.0
    %v465 = vsel %vm96, %v463, 0
    %467 = vmatpush.msra.mxu0 0.0
    %468 = vmatpush.msra.mxu0 0.0
    %469 = vmatpush.msra.mxu0 0.0
    %470 = vmatpush.msra.mxu0 0.0
    %471 = vmatpush.msra.mxu0 0.0
    %472 = vmatpush.msra.mxu0 0.0
    %473 = vmatpush.msra.mxu0 0.0
    %474 = vmatpush.msra.mxu0 0.0
    %475 = vmatpush.msra.mxu0 0.0
    %476 = vmatpush.msra.mxu0 0.0
    %477 = vmatpush.msra.mxu0 0.0
    %478 = vmatpush.msra.mxu0 0.0
    %479 = vmatpush.msra.mxu0 %v63
    %480 = vmatpush.msra.mxu0 %v62
    %481 = vmatpush.msra.mxu0 %v61
    %482 = vmatpush.msra.mxu0 %v60
    %483 = vmatmul.f32.gmra.mxu0 %v465
    %v484 = vpop.f32.mrf.mxu0
    %v485 = vadd.f32 %v149, %v484
    %486 = vdwg.mxu0
    %v487 = vmul.f32 %v485, 1.442695
    %v488 = vpow.pop %v487
    %v489 = vmul.f32 %v488, %v178
    %491 = vrot.lane.b32.xlu0 %v489, 120
    %v492 = vpop.permute.xlu0 %491
    %v494 = vadd.f32 %v485, %v492
    %v496 = vsel %vm68, %v494, 0
    %498 = vmatpush.msra.mxu0 0.0
    %499 = vmatpush.msra.mxu0 0.0
    %500 = vmatpush.msra.mxu0 0.0
    %501 = vmatpush.msra.mxu0 0.0
    %502 = vmatpush.msra.mxu0 0.0
    %503 = vmatpush.msra.mxu0 0.0
    %504 = vmatpush.msra.mxu0 0.0
    %505 = vmatpush.msra.mxu0 0.0
    %506 = vmatpush.msra.mxu0 0.0
    %507 = vmatpush.msra.mxu0 0.0
    %508 = vmatpush.msra.mxu0 0.0
    %509 = vmatpush.msra.mxu0 0.0
    %510 = vmatpush.msra.mxu0 0.0
    %511 = vmatpush.msra.mxu0 0.0
    %512 = vmatpush.msra.mxu0 0.0
    %513 = vmatpush.msra.mxu0 %v46
    %514 = vmatmul.f32.gmra.mxu0 %v496
    %v515 = vpop.f32.mrf.mxu0
    %v516 = vadd.f32 %v66, %v515
    %517 = vdwg.mxu0
    %v518 = vmax.f32 %v516, 0.0
    %v520 = vsel %vm96, %v518, 0
    %522 = vmatpush.msra.mxu0 0.0
    %523 = vmatpush.msra.mxu0 0.0
    %524 = vmatpush.msra.mxu0 0.0
    %525 = vmatpush.msra.mxu0 0.0
    %526 = vmatpush.msra.mxu0 0.0
    %527 = vmatpush.msra.mxu0 0.0
    %528 = vmatpush.msra.mxu0 0.0
    %529 = vmatpush.msra.mxu0 0.0
    %530 = vmatpush.msra.mxu0 0.0
    %531 = vmatpush.msra.mxu0 0.0
    %532 = vmatpush.msra.mxu0 0.0
    %533 = vmatpush.msra.mxu0 0.0
    %534 = vmatpush.msra.mxu0 %v51
    %535 = vmatpush.msra.mxu0 %v50
    %536 = vmatpush.msra.mxu0 %v49
    %537 = vmatpush.msra.mxu0 %v48
    %538 = vmatmul.f32.gmra.mxu0 %v520
    %v539 = vpop.f32.mrf.mxu0
    %v540 = vadd.f32 %v94, %v539
    %541 = vdwg.mxu0
    %v542 = vmax.f32 %v540, 0.0
    %v544 = vsel %vm96, %v542, 0
    %546 = vmatpush.msra.mxu0 0.0
    %547 = vmatpush.msra.mxu0 0.0
    %548 = vmatpush.msra.mxu0 0.0
    %549 = vmatpush.msra.mxu0 0.0
    %550 = vmatpush.msra.mxu0 0.0
    %551 = vmatpush.msra.mxu0 0.0
    %552 = vmatpush.msra.mxu0 0.0
    %553 = vmatpush.msra.mxu0 0.0
    %554 = vmatpush.msra.mxu0 0.0
    %555 = vmatpush.msra.mxu0 0.0
    %556 = vmatpush.msra.mxu0 0.0
    %557 = vmatpush.msra.mxu0 0.0
    %558 = vmatpush.msra.mxu0 %v56
    %559 = vmatpush.msra.mxu0 %v55
    %560 = vmatpush.msra.mxu0 %v54
    %561 = vmatpush.msra.mxu0 %v53
    %562 = vmatmul.f32.gmra.mxu0 %v544
    %v563 = vpop.f32.mrf.mxu0
    %v564 = vadd.f32 %v122, %v563
    %565 = vdwg.mxu0
    %v566 = vmax.f32 %v564, 0.0
    %v568 = vsel %vm96, %v566, 0
    %570 = vmatpush.msra.mxu0 0.0
    %571 = vmatpush.msra.mxu0 0.0
    %572 = vmatpush.msra.mxu0 0.0
    %573 = vmatpush.msra.mxu0 0.0
    %574 = vmatpush.msra.mxu0 0.0
    %575 = vmatpush.msra.mxu0 0.0
    %576 = vmatpush.msra.mxu0 0.0
    %577 = vmatpush.msra.mxu0 0.0
    %578 = vmatpush.msra.mxu0 0.0
    %579 = vmatpush.msra.mxu0 0.0
    %580 = vmatpush.msra.mxu0 0.0
    %581 = vmatpush.msra.mxu0 0.0
    %582 = vmatpush.msra.mxu0 %v63
    %583 = vmatpush.msra.mxu0 %v62
    %584 = vmatpush.msra.mxu0 %v61
    %585 = vmatpush.msra.mxu0 %v60
    %586 = vmatmul.f32.gmra.mxu0 %v568
    %v587 = vpop.f32.mrf.mxu0
    %v588 = vadd.f32 %v149, %v587
    %589 = vdwg.mxu0
    %v590 = vmul.f32 %v588, 1.442695
    %v591 = vpow.pop %v590
    %v592 = vmul.f32 %v591, %v178
    %594 = vrot.lane.b32.xlu0 %v592, 120
    %v595 = vpop.permute.xlu0 %594
    %v597 = vadd.f32 %v588, %v595
    %v599 = vsel %vm68, %v597, 0
    %601 = vmatpush.msra.mxu0 0.0
    %602 = vmatpush.msra.mxu0 0.0
    %603 = vmatpush.msra.mxu0 0.0
    %604 = vmatpush.msra.mxu0 0.0
    %605 = vmatpush.msra.mxu0 0.0
    %606 = vmatpush.msra.mxu0 0.0
    %607 = vmatpush.msra.mxu0 0.0
    %608 = vmatpush.msra.mxu0 0.0
    %609 = vmatpush.msra.mxu0 0.0
    %610 = vmatpush.msra.mxu0 0.0
    %611 = vmatpush.msra.mxu0 0.0
    %612 = vmatpush.msra.mxu0 0.0
    %613 = vmatpush.msra.mxu0 0.0
    %614 = vmatpush.msra.mxu0 0.0
    %615 = vmatpush.msra.mxu0 0.0
    %616 = vmatpush.msra.mxu0 %v46
    %617 = vmatmul.f32.gmra.mxu0 %v599
    %v618 = vpop.f32.mrf.mxu0
    %v619 = vadd.f32 %v66, %v618
    %620 = vdwg.mxu0
    %v621 = vmax.f32 %v619, 0.0
    %v623 = vsel %vm96, %v621, 0
    %625 = vmatpush.msra.mxu0 0.0
    %626 = vmatpush.msra.mxu0 0.0
    %627 = vmatpush.msra.mxu0 0.0
    %628 = vmatpush.msra.mxu0 0.0
    %629 = vmatpush.msra.mxu0 0.0
    %630 = vmatpush.msra.mxu0 0.0
    %631 = vmatpush.msra.mxu0 0.0
    %632 = vmatpush.msra.mxu0 0.0
    %633 = vmatpush.msra.mxu0 0.0
    %634 = vmatpush.msra.mxu0 0.0
    %635 = vmatpush.msra.mxu0 0.0
    %636 = vmatpush.msra.mxu0 0.0
    %637 = vmatpush.msra.mxu0 %v51
    %638 = vmatpush.msra.mxu0 %v50
    %639 = vmatpush.msra.mxu0 %v49
    %640 = vmatpush.msra.mxu0 %v48
    %641 = vmatmul.f32.gmra.mxu0 %v623
    %v642 = vpop.f32.mrf.mxu0
    %v643 = vadd.f32 %v94, %v642
    %644 = vdwg.mxu0
    %v645 = vmax.f32 %v643, 0.0
    %v647 = vsel %vm96, %v645, 0
    %649 = vmatpush.msra.mxu0 0.0
    %650 = vmatpush.msra.mxu0 0.0
    %651 = vmatpush.msra.mxu0 0.0
    %652 = vmatpush.msra.mxu0 0.0
    %653 = vmatpush.msra.mxu0 0.0
    %654 = vmatpush.msra.mxu0 0.0
    %655 = vmatpush.msra.mxu0 0.0
    %656 = vmatpush.msra.mxu0 0.0
    %657 = vmatpush.msra.mxu0 0.0
    %658 = vmatpush.msra.mxu0 0.0
    %659 = vmatpush.msra.mxu0 0.0
    %660 = vmatpush.msra.mxu0 0.0
    %661 = vmatpush.msra.mxu0 %v56
    %662 = vmatpush.msra.mxu0 %v55
    %663 = vmatpush.msra.mxu0 %v54
    %664 = vmatpush.msra.mxu0 %v53
    %665 = vmatmul.f32.gmra.mxu0 %v647
    %v666 = vpop.f32.mrf.mxu0
    %v667 = vadd.f32 %v122, %v666
    %668 = vdwg.mxu0
    %v669 = vmax.f32 %v667, 0.0
    %v671 = vsel %vm96, %v669, 0
    %673 = vmatpush.msra.mxu0 0.0
    %674 = vmatpush.msra.mxu0 0.0
    %675 = vmatpush.msra.mxu0 0.0
    %676 = vmatpush.msra.mxu0 0.0
    %677 = vmatpush.msra.mxu0 0.0
    %678 = vmatpush.msra.mxu0 0.0
    %679 = vmatpush.msra.mxu0 0.0
    %680 = vmatpush.msra.mxu0 0.0
    %681 = vmatpush.msra.mxu0 0.0
    %682 = vmatpush.msra.mxu0 0.0
    %683 = vmatpush.msra.mxu0 0.0
    %684 = vmatpush.msra.mxu0 0.0
    %685 = vmatpush.msra.mxu0 %v63
    %686 = vmatpush.msra.mxu0 %v62
    %687 = vmatpush.msra.mxu0 %v61
    %688 = vmatpush.msra.mxu0 %v60
    %689 = vmatmul.f32.gmra.mxu0 %v671
    %v690 = vpop.f32.mrf.mxu0
    %v691 = vadd.f32 %v149, %v690
    %692 = vdwg.mxu0
    %v693 = vmul.f32 %v691, 1.442695
    %v694 = vpow.pop %v693
    %v695 = vmul.f32 %v694, %v178
    %697 = vrot.lane.b32.xlu0 %v695, 120
    %v698 = vpop.permute.xlu0 %697
    %v700 = vadd.f32 %v691, %v698
    %v702 = vsel %vm68, %v700, 0
    %704 = vmatpush.msra.mxu0 0.0
    %705 = vmatpush.msra.mxu0 0.0
    %706 = vmatpush.msra.mxu0 0.0
    %707 = vmatpush.msra.mxu0 0.0
    %708 = vmatpush.msra.mxu0 0.0
    %709 = vmatpush.msra.mxu0 0.0
    %710 = vmatpush.msra.mxu0 0.0
    %711 = vmatpush.msra.mxu0 0.0
    %712 = vmatpush.msra.mxu0 0.0
    %713 = vmatpush.msra.mxu0 0.0
    %714 = vmatpush.msra.mxu0 0.0
    %715 = vmatpush.msra.mxu0 0.0
    %716 = vmatpush.msra.mxu0 0.0
    %717 = vmatpush.msra.mxu0 0.0
    %718 = vmatpush.msra.mxu0 0.0
    %719 = vmatpush.msra.mxu0 %v46
    %720 = vmatmul.f32.gmra.mxu0 %v702
    %v721 = vpop.f32.mrf.mxu0
    %v722 = vadd.f32 %v66, %v721
    %723 = vdwg.mxu0
    %v724 = vmax.f32 %v722, 0.0
    %v726 = vsel %vm96, %v724, 0
    %728 = vmatpush.msra.mxu0 0.0
    %729 = vmatpush.msra.mxu0 0.0
    %730 = vmatpush.msra.mxu0 0.0
    %731 = vmatpush.msra.mxu0 0.0
    %732 = vmatpush.msra.mxu0 0.0
    %733 = vmatpush.msra.mxu0 0.0
    %734 = vmatpush.msra.mxu0 0.0
    %735 = vmatpush.msra.mxu0 0.0
    %736 = vmatpush.msra.mxu0 0.0
    %737 = vmatpush.msra.mxu0 0.0
    %738 = vmatpush.msra.mxu0 0.0
    %739 = vmatpush.msra.mxu0 0.0
    %740 = vmatpush.msra.mxu0 %v51
    %741 = vmatpush.msra.mxu0 %v50
    %742 = vmatpush.msra.mxu0 %v49
    %743 = vmatpush.msra.mxu0 %v48
    %744 = vmatmul.f32.gmra.mxu0 %v726
    %v745 = vpop.f32.mrf.mxu0
    %v746 = vadd.f32 %v94, %v745
    %747 = vdwg.mxu0
    %v748 = vmax.f32 %v746, 0.0
    %v750 = vsel %vm96, %v748, 0
    %752 = vmatpush.msra.mxu0 0.0
    %753 = vmatpush.msra.mxu0 0.0
    %754 = vmatpush.msra.mxu0 0.0
    %755 = vmatpush.msra.mxu0 0.0
    %756 = vmatpush.msra.mxu0 0.0
    %757 = vmatpush.msra.mxu0 0.0
    %758 = vmatpush.msra.mxu0 0.0
    %759 = vmatpush.msra.mxu0 0.0
    %760 = vmatpush.msra.mxu0 0.0
    %761 = vmatpush.msra.mxu0 0.0
    %762 = vmatpush.msra.mxu0 0.0
    %763 = vmatpush.msra.mxu0 0.0
    %764 = vmatpush.msra.mxu0 %v56
    %765 = vmatpush.msra.mxu0 %v55
    %766 = vmatpush.msra.mxu0 %v54
    %767 = vmatpush.msra.mxu0 %v53
    %768 = vmatmul.f32.gmra.mxu0 %v750
    %v769 = vpop.f32.mrf.mxu0
    %v770 = vadd.f32 %v122, %v769
    %771 = vdwg.mxu0
    %v772 = vmax.f32 %v770, 0.0
    %v774 = vsel %vm96, %v772, 0
    %776 = vmatpush.msra.mxu0 0.0
    %777 = vmatpush.msra.mxu0 0.0
    %778 = vmatpush.msra.mxu0 0.0
    %779 = vmatpush.msra.mxu0 0.0
    %780 = vmatpush.msra.mxu0 0.0
    %781 = vmatpush.msra.mxu0 0.0
    %782 = vmatpush.msra.mxu0 0.0
    %783 = vmatpush.msra.mxu0 0.0
    %784 = vmatpush.msra.mxu0 0.0
    %785 = vmatpush.msra.mxu0 0.0
    %786 = vmatpush.msra.mxu0 0.0
    %787 = vmatpush.msra.mxu0 0.0
    %788 = vmatpush.msra.mxu0 %v63
    %789 = vmatpush.msra.mxu0 %v62
    %790 = vmatpush.msra.mxu0 %v61
    %791 = vmatpush.msra.mxu0 %v60
    %792 = vmatmul.f32.gmra.mxu0 %v774
    %v793 = vpop.f32.mrf.mxu0
    %v794 = vadd.f32 %v149, %v793
    %795 = vdwg.mxu0
    %v796 = vmul.f32 %v794, 1.442695
    %v797 = vpow.pop %v796
    %v798 = vmul.f32 %v797, %v178
    %800 = vrot.lane.b32.xlu0 %v798, 120
    %v801 = vpop.permute.xlu0 %800
    %v803 = vadd.f32 %v794, %v801
    %v805 = vsel %vm68, %v803, 0
    %807 = vmatpush.msra.mxu0 0.0
    %808 = vmatpush.msra.mxu0 0.0
    %809 = vmatpush.msra.mxu0 0.0
    %810 = vmatpush.msra.mxu0 0.0
    %811 = vmatpush.msra.mxu0 0.0
    %812 = vmatpush.msra.mxu0 0.0
    %813 = vmatpush.msra.mxu0 0.0
    %814 = vmatpush.msra.mxu0 0.0
    %815 = vmatpush.msra.mxu0 0.0
    %816 = vmatpush.msra.mxu0 0.0
    %817 = vmatpush.msra.mxu0 0.0
    %818 = vmatpush.msra.mxu0 0.0
    %819 = vmatpush.msra.mxu0 0.0
    %820 = vmatpush.msra.mxu0 0.0
    %821 = vmatpush.msra.mxu0 0.0
    %822 = vmatpush.msra.mxu0 %v46
    %823 = vmatmul.f32.gmra.mxu0 %v805
    %v824 = vpop.f32.mrf.mxu0
    %v825 = vadd.f32 %v66, %v824
    %826 = vdwg.mxu0
    %v827 = vmax.f32 %v825, 0.0
    %v829 = vsel %vm96, %v827, 0
    %831 = vmatpush.msra.mxu0 0.0
    %832 = vmatpush.msra.mxu0 0.0
    %833 = vmatpush.msra.mxu0 0.0
    %834 = vmatpush.msra.mxu0 0.0
    %835 = vmatpush.msra.mxu0 0.0
    %836 = vmatpush.msra.mxu0 0.0
    %837 = vmatpush.msra.mxu0 0.0
    %838 = vmatpush.msra.mxu0 0.0
    %839 = vmatpush.msra.mxu0 0.0
    %840 = vmatpush.msra.mxu0 0.0
    %841 = vmatpush.msra.mxu0 0.0
    %842 = vmatpush.msra.mxu0 0.0
    %843 = vmatpush.msra.mxu0 %v51
    %844 = vmatpush.msra.mxu0 %v50
    %845 = vmatpush.msra.mxu0 %v49
    %846 = vmatpush.msra.mxu0 %v48
    %847 = vmatmul.f32.gmra.mxu0 %v829
    %v848 = vpop.f32.mrf.mxu0
    %v849 = vadd.f32 %v94, %v848
    %850 = vdwg.mxu0
    %v851 = vmax.f32 %v849, 0.0
    %v853 = vsel %vm96, %v851, 0
    %855 = vmatpush.msra.mxu0 0.0
    %856 = vmatpush.msra.mxu0 0.0
    %857 = vmatpush.msra.mxu0 0.0
    %858 = vmatpush.msra.mxu0 0.0
    %859 = vmatpush.msra.mxu0 0.0
    %860 = vmatpush.msra.mxu0 0.0
    %861 = vmatpush.msra.mxu0 0.0
    %862 = vmatpush.msra.mxu0 0.0
    %863 = vmatpush.msra.mxu0 0.0
    %864 = vmatpush.msra.mxu0 0.0
    %865 = vmatpush.msra.mxu0 0.0
    %866 = vmatpush.msra.mxu0 0.0
    %867 = vmatpush.msra.mxu0 %v56
    %868 = vmatpush.msra.mxu0 %v55
    %869 = vmatpush.msra.mxu0 %v54
    %870 = vmatpush.msra.mxu0 %v53
    %871 = vmatmul.f32.gmra.mxu0 %v853
    %v872 = vpop.f32.mrf.mxu0
    %v873 = vadd.f32 %v122, %v872
    %874 = vdwg.mxu0
    %v875 = vmax.f32 %v873, 0.0
    %v877 = vsel %vm96, %v875, 0
    %879 = vmatpush.msra.mxu0 0.0
    %880 = vmatpush.msra.mxu0 0.0
    %881 = vmatpush.msra.mxu0 0.0
    %882 = vmatpush.msra.mxu0 0.0
    %883 = vmatpush.msra.mxu0 0.0
    %884 = vmatpush.msra.mxu0 0.0
    %885 = vmatpush.msra.mxu0 0.0
    %886 = vmatpush.msra.mxu0 0.0
    %887 = vmatpush.msra.mxu0 0.0
    %888 = vmatpush.msra.mxu0 0.0
    %889 = vmatpush.msra.mxu0 0.0
    %890 = vmatpush.msra.mxu0 0.0
    %891 = vmatpush.msra.mxu0 %v63
    %892 = vmatpush.msra.mxu0 %v62
    %893 = vmatpush.msra.mxu0 %v61
    %894 = vmatpush.msra.mxu0 %v60
    %895 = vmatmul.f32.gmra.mxu0 %v877
    %v896 = vpop.f32.mrf.mxu0
    %v897 = vadd.f32 %v149, %v896
    %898 = vdwg.mxu0
    %v899 = vmul.f32 %v897, 1.442695
    %v900 = vpow.pop %v899
    %v901 = vmul.f32 %v900, %v178
    %903 = vrot.lane.b32.xlu0 %v901, 120
    %v904 = vpop.permute.xlu0 %903
    %v906 = vadd.f32 %v897, %v904
    %907 = vst.msk [vmem:[#allocation5] sm:$0xff] %vm68, %v906
    %909 = vrot.lane.b32.xlu0 %v897, 120
    %v910 = vpop.permute.xlu0 %909
    %v912 = vsel %vm68, %v910, 0.0
    %913 = vadd.xlane.f32.xlu0 %v912
    %v914 = vpop.xlane.xlu0 %913
    %vm915 = vcmask 7168
    %916 = vst.msk [vmem:[%s8] sm:$0xff] %vm915, %v914
    // Predicated region
    $region34: #{tpu_custom_call.1} parent=1 // pred_check
      _
    $region35: #{tpu_custom_call.1} parent=1 // pred_check_branch
      %918 = sbr.rel (0) target = $region37
    $region36: #{tpu_custom_call.1} parent=1 // pred_region
      %920 = vsyncadd [#allocation4], 0
      %s922 = sshll.u32 [#allocation5], 4
      %s923 = int_to_ptr.vmem [resolvable:$true] %s922
      %s924 = sshll.u32 %s7, 4
      %s925 = int_to_ptr.hbm [resolvable:$true] %s924
      %927 = dma.vmem_to_hbm [thread:$0]  %s923, 128, %s925, [#allocation4]
    $region37: #{tpu_custom_call.1} parent=1 // pred_fallthru
      _
    // Predicated region
    $region38: #{tpu_custom_call.1} parent=1 // pred_check
      _
    $region39: #{tpu_custom_call.1} parent=1 // pred_check_branch
      %929 = sbr.rel (0) target = $region41
    $region40: #{tpu_custom_call.1} parent=1 // pred_region
      _
    $region41: #{tpu_custom_call.1} parent=1 // pred_fallthru
      _
    // Predicated region
    $region42: #{tpu_custom_call.1} parent=1 // pred_check
      _
    $region43: #{tpu_custom_call.1} parent=1 // pred_check_branch
      %931 = sbr.rel (0) target = $region45
    $region44: #{tpu_custom_call.1} parent=1 // pred_region
      %933 = dma.done [#allocation4], 128
    $region45: #{tpu_custom_call.1} parent=1 // pred_fallthru
      _
    // Predicated region
    $region46: #{tpu_custom_call.1} parent=1 // pred_check
      _
    $region47: #{tpu_custom_call.1} parent=1 // pred_check_branch
      %935 = sbr.rel (0) target = $region49
    $region48: #{tpu_custom_call.1} parent=1 // pred_region
      _
    $region49: #{tpu_custom_call.1} parent=1 // pred_fallthru
      _
    %936 = vsyncpa [#allocation3], 1
    %937 = vsyncpa [#allocation4], 1

</llo_original>
